<compile_context>
chip_gen: v7x
topology: tpu7x:2x2x1
jax: 0.10.0
libtpu: 0.0.40
codegen_flags: <defaults>
</compile_context>

<pallas_src>
import functools

import jax
import jax.numpy as jnp
from jax.experimental import pallas as pl
from jax.experimental.pallas import tpu as pltpu


_BLOCK_BUDGET_BYTES = 2 << 20  # target bytes per perturb block (double-buffered)


def _choose_row_tile(D: int, itemsize: int, block_rows=None):
    """Pick (TM, n_row_tiles) for the perturb row (output) dimension."""
    if block_rows is not None:
        tm = int(block_rows)
        if tm >= D:
            return D, 1
        assert tm % 128 == 0, "row tile must be a multiple of 128 when tiling rows"
        return tm, pl.cdiv(D, tm)
    if D * D * itemsize <= _BLOCK_BUDGET_BYTES:
        return D, 1  # whole matrix rows in one tile; all block dims == array dims
    # TODO(synk): for extremely wide D (128*D*itemsize > budget) the contraction
    # dim should also be tiled with an accumulator; not needed at module scales.
    tm = max(128, (_BLOCK_BUDGET_BYTES // (D * itemsize)) // 128 * 128)
    return tm, pl.cdiv(D, tm)


def _choose_batch_tile(B: int, tm: int, D: int, itemsize: int) -> int:
    """Largest divisor of B whose perturb block stays within the byte budget."""
    cap = max(1, _BLOCK_BUDGET_BYTES // max(1, tm * D * itemsize))
    tb = 1
    for cand in range(1, min(B, cap) + 1):
        if B % cand == 0:
            tb = cand
    return tb


def _perturbation_kernel(x_ref, p_ref, o_ref):
    # x_ref: (TB, 1, D)   p_ref: (TB, TM, D)   o_ref: (TB, 1, TM)
    x32 = x_ref[...].astype(jnp.float32)          # cast hoisted once per tile
    p32 = p_ref[...].astype(jnp.float32)
    prod = p32 * x32                              # VPU broadcast-multiply
    acc = jnp.sum(prod, axis=-1)                  # XLU lane reduction -> (TB, TM)
    o_ref[...] = acc[:, None, :].astype(o_ref.dtype)


@functools.partial(jax.jit, static_argnames=("block_rows",))
def perturbation_forward(inp, perturb, block_rows=None):
    """out[b, i] = sum_j perturb[b, i, j] * inp[b, j], then squeeze (torch semantics)."""
    B, D = inp.shape
    assert perturb.shape == (B, D, D), (perturb.shape, (B, D, D))
    out_dtype = jnp.result_type(inp.dtype, perturb.dtype)
    itemsize = jnp.dtype(perturb.dtype).itemsize

    tm, n_row = _choose_row_tile(D, itemsize, block_rows)
    tb = _choose_batch_tile(B, tm, D, itemsize)
    out_cols = n_row * tm                          # padded so output stores are unmasked
    grid = (B // tb, n_row)

    x3 = inp.reshape(B, 1, D)

    cost = pl.CostEstimate(
        flops=int(2 * B * D * D),
        transcendentals=0,
        bytes_accessed=int(
            perturb.size * itemsize
            + inp.size * jnp.dtype(inp.dtype).itemsize
            + B * D * jnp.dtype(out_dtype).itemsize
        ),
    )

    out_p = pl.pallas_call(
        _perturbation_kernel,
        out_shape=jax.ShapeDtypeStruct((B, 1, out_cols), out_dtype),
        grid_spec=pltpu.PrefetchScalarGridSpec(
            num_scalar_prefetch=0,
            grid=grid,
            in_specs=[
                # x: TB batch rows, full feature width (reused across row tiles).
                pl.BlockSpec((tb, 1, D), lambda b, i: (b, 0, 0)),
                # perturb: TB batches, TM output rows, full contraction width.
                pl.BlockSpec((tb, tm, D), lambda b, i: (b, i, 0)),
            ],
            out_specs=pl.BlockSpec((tb, 1, tm), lambda b, i: (b, 0, i)),
        ),
        compiler_params=pltpu.CompilerParams(
            dimension_semantics=("parallel", "parallel"),
            vmem_limit_bytes=32 * 1024 * 1024,
        ),
        cost_estimate=cost,
    )(x3, perturb)

    out = out_p[:, 0, :D]
    # torch.squeeze removes all size-1 dims (matters when B == 1 or D == 1).
    return jnp.squeeze(out)


class Perturbation:
    """JAX/Pallas port of the PyTorch Perturbation layer."""

    def __init__(self, output_dim, dtype=jnp.float32):
        # Mirrors the PyTorch __init__: frozen and (as in the original forward) unused.
        self.weights = jnp.ones((output_dim, output_dim), dtype=dtype)
        self.bias = jnp.zeros((output_dim,), dtype=dtype)
        self.dtype = dtype
        self.output_dim = output_dim

    def __call__(self, inp, perturb, block_rows=None):
        return perturbation_forward(inp, perturb, block_rows=block_rows)


if __name__ == "__main__":
    key = jax.random.PRNGKey(0)

    def check(B, D, block_rows=None):
        k1, k2 = jax.random.split(jax.random.fold_in(key, 1000 * B + D))
        x = jax.random.normal(k1, (B, D), dtype=jnp.float32)
        p = jax.random.normal(k2, (B, D, D), dtype=jnp.float32)
        layer = Perturbation(output_dim=D, dtype=jnp.float32)
        out = jax.block_until_ready(layer(x, p, block_rows=block_rows))
        ref = jnp.squeeze(
            jnp.matmul(p, x[..., None], precision=jax.lax.Precision.HIGHEST)
        )
        assert out.shape == ref.shape, (out.shape, ref.shape)
        assert jnp.allclose(out, ref, atol=1e-4, rtol=1e-4), (
            f"mismatch at B={B}, D={D}"
        )

    # Tiny module-consistent shape: single block, both batches packed (grid (1,1)).
    check(2, 32)
    # Multiple-of-128 shape exercising the row-tile grid (grid (1, 3)).
    check(2, 384, block_rows=128)
    # Non-128-aligned D with a partial last row tile + padded lane-dense output.
    check(2, 200, block_rows=128)
    # B == 1: torch.squeeze drops the batch dim too.
    check(1, 96)

    print("KERNEL_OK")
</pallas_src>

<mosaic_0001>
module attributes {stable_mosaic.version = 11 : i64} {
  func.func @_perturbation_kernel(%arg0: i32, %arg1: i32, %arg2: memref<2x1x32xf32, #tpu.memory_space<vmem>>, %arg3: memref<2x32x32xf32, #tpu.memory_space<vmem>>, %arg4: memref<2x1x32xf32, #tpu.memory_space<vmem>>) attributes {dimension_semantics = [#tpu.dimension_semantics<parallel>, #tpu.dimension_semantics<parallel>], iteration_bounds = array<i64: 1, 1>, scalar_prefetch = 0 : i64, scratch_operands = 0 : i64, tpu.core_type = #tpu.core_type<tc>, window_params = [{transform_indices = @transform_0, window_bounds = array<i64: 2, 1, 32>}, {transform_indices = @transform_1, window_bounds = array<i64: 2, 32, 32>}, {transform_indices = @transform_2, window_bounds = array<i64: 2, 1, 32>}]} {
    %c0 = arith.constant 0 : index
    %c0_0 = arith.constant 0 : index
    %c0_1 = arith.constant 0 : index
    %0 = vector.load %arg2[%c0, %c0_0, %c0_1] : memref<2x1x32xf32, #tpu.memory_space<vmem>>, vector<2x1x32xf32>
    %c0_2 = arith.constant 0 : index
    %c0_3 = arith.constant 0 : index
    %c0_4 = arith.constant 0 : index
    %1 = vector.load %arg3[%c0_2, %c0_3, %c0_4] : memref<2x32x32xf32, #tpu.memory_space<vmem>>, vector<2x32x32xf32>
    %2 = vector.broadcast %0 : vector<2x1x32xf32> to vector<2x32x32xf32>
    %3 = arith.mulf %1, %2 : vector<2x32x32xf32>
    %cst = arith.constant dense<0.000000e+00> : vector<2x32xf32>
    %4 = vector.multi_reduction <add>, %3, %cst [2] : vector<2x32x32xf32> to vector<2x32xf32>
    %5 = vector.shape_cast %4 : vector<2x32xf32> to vector<2x1x32xf32>
    %c0_5 = arith.constant 0 : index
    %c0_6 = arith.constant 0 : index
    %c0_7 = arith.constant 0 : index
    %6 = vector.load %arg4[%c0_5, %c0_6, %c0_7] : memref<2x1x32xf32, #tpu.memory_space<vmem>>, vector<2x1x32xf32>
    tpu.vector_store %arg4[%c0_5, %c0_6, %c0_7], %5 {strides = array<i32>} : memref<2x1x32xf32, #tpu.memory_space<vmem>>, vector<2x1x32xf32>,
    return
  }
  func.func @transform_0(%arg0: i32, %arg1: i32) -> (i32, i32, i32) {
    %c0_i32 = arith.constant 0 : i32
    %c0_i32_0 = arith.constant 0 : i32
    %c0_i32_1 = arith.constant 0 : i32
    return %arg0, %c0_i32, %c0_i32_0 : i32, i32, i32
  }
  func.func @transform_1(%arg0: i32, %arg1: i32) -> (i32, i32, i32) {
    %c0_i32 = arith.constant 0 : i32
    %c0_i32_0 = arith.constant 0 : i32
    return %arg0, %arg1, %c0_i32 : i32, i32, i32
  }
  func.func @transform_2(%arg0: i32, %arg1: i32) -> (i32, i32, i32) {
    %c0_i32 = arith.constant 0 : i32
    %c0_i32_0 = arith.constant 0 : i32
    return %arg0, %c0_i32, %arg1 : i32, i32, i32
  }
}

</mosaic_0001>

<llo_original>
// kernel: perturbation_forward.1
$region0: #{perturbation_forward.1}
  #allocation0 [shape = 'u32[]', space=smem, size = 0x4, offset = 0x4, fixed_abs, tag = 'smem constant byte address 0x4 - core index']
  #allocation1 [shape = 'u32[144,128]{1,0:T(1,128)}', space=vmem, size = 0x12000, scoped, tag = 'internal scratch']
  %s0 = inlined_call_operand.vmem [shape: f32[2,1,32], index: 0, kind: input, shape index: {}]
  %s1 = inlined_call_operand.hbm [shape: f32[2,32,32], index: 1, kind: input, shape index: {}]
  %s2 = inlined_call_operand.hbm [shape: f32[2,1,32], index: 2, kind: output, shape index: {}]
  %s3 = sld [smem:[#allocation0]]
  $region22: #{perturbation_forward.1} parent=0
    _
  %s5 = ssub.s32 1, %s3
  %s6 = scalar_select 0, %s5, %s3
  $region1: #{perturbation_forward.1} parent=0
    #allocation2 [shape = 'u8[32768]{0}', space=vmem, size = 0x8000, scoped, tag = 'input window, operand 1, single buffered']
    #allocation3 [shape = 's32[1]{0}', space=sflag, size = 0x4, scoped, tag = 'scoped memory for perturbation_forward.1']
    #allocation4 [shape = 's32[1]{0}', space=sflag, size = 0x4, scoped, tag = 'scoped memory for perturbation_forward.1']
    #allocation5 [shape = 'u8[1024]{0}', space=vmem, size = 0x400, scoped, tag = 'output window, operand 0, single buffered']
    %7 = vsyncpa [#allocation3], 0
    %8 = vsyncpa [#allocation4], 0
    // Predicated region
    $region2: #{perturbation_forward.1} parent=1 // pred_check
      _
    $region3: #{perturbation_forward.1} parent=1 // pred_check_branch
      %10 = sbr.rel (0) target = $region5
    $region4: #{perturbation_forward.1} parent=1 // pred_region
      _
    $region5: #{perturbation_forward.1} parent=1 // pred_fallthru
      _
    // Predicated region
    $region6: #{perturbation_forward.1} parent=1 // pred_check
      _
    $region7: #{perturbation_forward.1} parent=1 // pred_check_branch
      %12 = sbr.rel (0) target = $region9
    $region8: #{perturbation_forward.1} parent=1 // pred_region
      %s14 = ssub.s32 1024, 1024
      %15 = vsyncadd [#allocation3], %s14
      %s16 = sshll.u32 [#allocation2], 4
      %s17 = int_to_ptr.vmem [resolvable:$true] %s16
      %22 = dma.hbm_to_vmem [thread:$0]  %s1, 1024, %s17, [#allocation3], 128, 128, 8
    $region9: #{perturbation_forward.1} parent=1 // pred_fallthru
      _
    // Predicated region
    $region10: #{perturbation_forward.1} parent=1 // pred_check
      _
    $region11: #{perturbation_forward.1} parent=1 // pred_check_branch
      %24 = sbr.rel (0) target = $region13
    $region12: #{perturbation_forward.1} parent=1 // pred_region
      %25 = dma.done [#allocation3], 1024
    $region13: #{perturbation_forward.1} parent=1 // pred_fallthru
      _
    %v26 = vld [vmem:[%s0] sm:$0x1]
    %v27 = vld [vmem:[%s0 + $0x1] sm:$0x1]
    %v28 = vld [vmem:[#allocation2] sm:$0xff]
    %v29 = vld [vmem:[#allocation2 + $0x8] sm:$0xff]
    %v30 = vld [vmem:[#allocation2 + $0x10] sm:$0xff]
    %v31 = vld [vmem:[#allocation2 + $0x18] sm:$0xff]
    %v32 = vld [vmem:[#allocation2 + $0x20] sm:$0xff]
    %v33 = vld [vmem:[#allocation2 + $0x28] sm:$0xff]
    %v34 = vld [vmem:[#allocation2 + $0x30] sm:$0xff]
    %v35 = vld [vmem:[#allocation2 + $0x38] sm:$0xff]
    %v38 = vlaneseq
    %v39 = vshrl.u32 %v38, 7
    %v40 = vsub.s32 0, %v39
    %v41 = vrot.slane %v26, %v40
    %v42 = vlaneseq
    %v43 = vshrl.u32 %v42, 7
    %v44 = vsub.s32 0, %v43
    %v45 = vrot.slane %v27, %v44
    %v48 = vmul.f32 %v28, %v41
    %v49 = vmul.f32 %v29, %v41
    %v50 = vmul.f32 %v30, %v41
    %v51 = vmul.f32 %v31, %v41
    %v52 = vmul.f32 %v32, %v45
    %v53 = vmul.f32 %v33, %v45
    %v54 = vmul.f32 %v34, %v45
    %v55 = vmul.f32 %v35, %v45
    %vm56 = vcmask 261120
    %v57 = vsel %vm56, %v48, 0.0
    %58 = vadd.xlane.f32.xlu0 %v57
    %v59 = vpop.xlane.xlu0 %58
    %v60 = vsel %vm56, %v49, 0.0
    %61 = vadd.xlane.f32.xlu0 %v60
    %v62 = vpop.xlane.xlu0 %61
    %v63 = vsel %vm56, %v50, 0.0
    %64 = vadd.xlane.f32.xlu0 %v63
    %v65 = vpop.xlane.xlu0 %64
    %v66 = vsel %vm56, %v51, 0.0
    %67 = vadd.xlane.f32.xlu0 %v66
    %v68 = vpop.xlane.xlu0 %67
    %v69 = vsel %vm56, %v52, 0.0
    %70 = vadd.xlane.f32.xlu0 %v69
    %v71 = vpop.xlane.xlu0 %70
    %v72 = vsel %vm56, %v53, 0.0
    %73 = vadd.xlane.f32.xlu0 %v72
    %v74 = vpop.xlane.xlu0 %73
    %v75 = vsel %vm56, %v54, 0.0
    %76 = vadd.xlane.f32.xlu0 %v75
    %v77 = vpop.xlane.xlu0 %76
    %v78 = vsel %vm56, %v55, 0.0
    %79 = vadd.xlane.f32.xlu0 %v78
    %v80 = vpop.xlane.xlu0 %79
    %v89 = vlaneseq
    %v90 = vand.u32 %v89, 127
    %v91 = vlaneseq
    %v92 = vshrl.u32 %v91, 7
    %v93 = vsub.s32 %v90, %v92
    %v94 = vrot.slane %v59, %v93
    %v95 = vadd.s32 %v90, 4294967288
    %v96 = vlaneseq
    %v97 = vshrl.u32 %v96, 7
    %v98 = vsub.s32 %v95, %v97
    %v99 = vrot.slane %v62, %v98
    %vm100 = vcmask 130112
    %v101 = vsel %vm100, %v99, %v94
    %v102 = vadd.s32 %v90, 4294967280
    %v103 = vlaneseq
    %v104 = vshrl.u32 %v103, 7
    %v105 = vsub.s32 %v102, %v104
    %v106 = vrot.slane %v65, %v105
    %vm107 = vcmask 195712
    %v108 = vsel %vm107, %v106, %v101
    %v109 = vadd.s32 %v90, 4294967272
    %v110 = vlaneseq
    %v111 = vshrl.u32 %v110, 7
    %v112 = vsub.s32 %v109, %v111
    %v113 = vrot.slane %v68, %v112
    %vm114 = vcmask 261312
    %v115 = vsel %vm114, %v113, %v108
    %v116 = vlaneseq
    %v117 = vshrl.u32 %v116, 7
    %v118 = vsub.s32 %v90, %v117
    %v119 = vrot.slane %v71, %v118
    %v120 = vlaneseq
    %v121 = vshrl.u32 %v120, 7
    %v122 = vsub.s32 %v95, %v121
    %v123 = vrot.slane %v74, %v122
    %v124 = vsel %vm100, %v123, %v119
    %v125 = vlaneseq
    %v126 = vshrl.u32 %v125, 7
    %v127 = vsub.s32 %v102, %v126
    %v128 = vrot.slane %v77, %v127
    %v129 = vsel %vm107, %v128, %v124
    %v130 = vlaneseq
    %v131 = vshrl.u32 %v130, 7
    %v132 = vsub.s32 %v109, %v131
    %v133 = vrot.slane %v80, %v132
    %v134 = vsel %vm114, %v133, %v129
    %vm137 = vcmask 253952
    %138 = vst.msk [vmem:[#allocation5] sm:$0x1] %vm137, %v115
    %139 = vst.msk [vmem:[#allocation5 + $0x1] sm:$0x1] %vm137, %v134
    // Predicated region
    $region14: #{perturbation_forward.1} parent=1 // pred_check
      _
    $region15: #{perturbation_forward.1} parent=1 // pred_check_branch
      %141 = sbr.rel (0) target = $region17
    $region16: #{perturbation_forward.1} parent=1 // pred_region
      %s143 = ssub.s32 32, 32
      %144 = vsyncadd [#allocation4], %s143
      %s145 = sshll.u32 [#allocation5], 4
      %s146 = int_to_ptr.vmem [resolvable:$true] %s145
      %151 = dma.vmem_to_hbm [thread:$0]  %s146, 32, %s2, [#allocation4], 16, 16, 1
    $region17: #{perturbation_forward.1} parent=1 // pred_fallthru
      _
    // Predicated region
    $region18: #{perturbation_forward.1} parent=1 // pred_check
      _
    $region19: #{perturbation_forward.1} parent=1 // pred_check_branch
      %153 = sbr.rel (0) target = $region21
    $region20: #{perturbation_forward.1} parent=1 // pred_region
      %154 = dma.done [#allocation4], 32
    $region21: #{perturbation_forward.1} parent=1 // pred_fallthru
      _
    %155 = vsyncpa [#allocation3], 1
    %156 = vsyncpa [#allocation4], 1

</llo_original>
